<compile_context>
chip_gen: v6e
topology: v6e:2x2x1
jax: 0.10.0
libtpu: 0.0.40
codegen_flags: <defaults>
</compile_context>

<pallas_src>
import functools
import math

import jax
import jax.numpy as jnp
from jax.experimental import pallas as pl
from jax.experimental.pallas import tpu as pltpu


def _round_up(x: int, m: int) -> int:
    return (x + m - 1) // m * m


def _mlp_kernel(x_ref, w1_ref, b1_ref, w2_ref, b2_ref, out_ref, *, compute_dtype):
    # x_ref  : [tb, tq, dz]   row tile of the (virtually sliced) tokens
    # w1_ref : [dz, dh_p]     b1_ref: [1, dh_p]   (resident, single-buffered)
    # w2_ref : [dh_p, dy]     b2_ref: [1, dy]
    # out_ref: [tb, tq, dy]
    tb, tq, dz = x_ref.shape
    dy = out_ref.shape[-1]
    # Cast to the MXU input dtype in VMEM (no extra HBM pass in the wrapper).
    x = x_ref[...].reshape(tb * tq, dz).astype(compute_dtype)
    h = jnp.dot(x, w1_ref[...], preferred_element_type=jnp.float32)
    h = jnp.maximum(h + b1_ref[...], 0.0)                       # f32 epilogue
    y = jnp.dot(h.astype(w2_ref.dtype), w2_ref[...],
                preferred_element_type=jnp.float32)
    y = y + b2_ref[...]
    out_ref[...] = y.astype(out_ref.dtype).reshape(tb, tq, dy)


def _resident_spec(shape):
    """BlockSpec for an operand whose block never changes across the grid."""
    idx = lambda bi, ti: (0, 0)
    try:
        # Single-buffer constant operands: index_map is constant -> fetched once.
        return pl.BlockSpec(shape, idx, pipeline_mode=pl.Buffered(1))
    except (TypeError, ValueError):
        # Older Pallas without pipeline_mode support: default double-buffering.
        return pl.BlockSpec(shape, idx)


def _pick_token_tile(token_dim, nt, off, max_rows, sublane):
    """Largest legal token tile: either the full token dim, or a multiple of
    `sublane` that also divides the static slice offset `off`."""
    if off == 0 and token_dim <= max_rows:
        return token_dim
    t = min(max_rows, _round_up(nt, sublane))
    t = (t // sublane) * sublane
    while t >= sublane:
        if off % t == 0:
            return t
        t -= sublane
    return None


def _vmem_bytes_estimate(tb, tq, dz, dh_p, dy, x_bytes, w_bytes, out_bytes):
    est = 2 * tb * tq * dz * x_bytes            # double-buffered activation tiles
    est += 2 * tb * tq * dy * out_bytes         # double-buffered output tiles
    est += (dz * dh_p + dh_p * dy) * w_bytes    # weights, single-buffered
    est += (dh_p + dy) * 4                      # biases (f32)
    est += tb * tq * (dz + dh_p + dy) * 4       # in-kernel temporaries (x, h, y)
    return est


def tnpd_decoder(z, xt, w1, b1, w2, b2, *, tile_rows=512, compute_dtype=jnp.bfloat16):
    """z: [m, ..., n, dz], xt: [m, nt, dx]  ->  [m, ..., nt, dy]."""
    nt = xt.shape[-2]
    n, dz = z.shape[-2], z.shape[-1]
    if not (0 < nt <= n):
        raise ValueError(f"need 0 < nt <= n, got nt={nt}, n={n}")
    dh = w1.shape[-1]
    dy = w2.shape[-1]
    out_dtype = z.dtype
    lead = tuple(z.shape[:-2])
    B = math.prod(lead) if lead else 1

    cd = jnp.dtype(compute_dtype) if compute_dtype is not None else jnp.dtype(z.dtype)

    # --- Weights: pad dh to a lane-dense multiple of 128 (exact: ReLU(0)=0 and
    #     the extra W2 rows are zero). Tiny arrays, negligible cost.
    w1 = jnp.asarray(w1).reshape(dz, dh)
    w2 = jnp.asarray(w2).reshape(dh, dy)
    b1 = jnp.asarray(b1).reshape(1, dh).astype(jnp.float32)
    b2 = jnp.asarray(b2).reshape(1, dy).astype(jnp.float32)
    dh_p = _round_up(dh, 128)
    if dh_p != dh:
        w1 = jnp.pad(w1, ((0, 0), (0, dh_p - dh)))
        b1 = jnp.pad(b1, ((0, 0), (0, dh_p - dh)))
        w2 = jnp.pad(w2, ((0, dh_p - dh), (0, 0)))
    w1 = w1.astype(cd)
    w2 = w2.astype(cd)

    # --- Activations: merge leading dims (free reshape); the `-nt:` token slice
    #     is expressed via the BlockSpec index_map whenever tiling allows.
    z3 = z.reshape(B, n, dz)
    sublane = 8 * max(1, 4 // jnp.dtype(z.dtype).itemsize)   # 8 f32 / 16 bf16 / 32 int8
    off = n - nt
    tq = _pick_token_tile(n, nt, off, tile_rows, sublane)
    if tq is None:
        # Unaligned slice offset: fall back to a single wrapper-side slice copy.
        # TODO(synk): pl.Element on the token axis would avoid this copy.
        z3 = jax.lax.slice_in_dim(z3, off, n, axis=1)
        off = 0
        tq = _pick_token_tile(nt, nt, 0, tile_rows, sublane)
    off_blk = off // tq
    num_tq = pl.cdiv(nt, tq)          # token tiles covering the last nt tokens

    # --- Batch tile: fill the row budget, but keep >= 2 grid steps when possible
    #     so "parallel" semantics can shard across v7x's 2 TensorCores.
    tb = max(1, min(B, tile_rows // max(tq, 1)))
    if B >= 2:
        tb = min(tb, (B + 1) // 2)
    grid = (pl.cdiv(B, tb), num_tq)

    # --- Generation-aware VMEM budget (~85% of per-core VMEM, 32 MiB floor).
    try:
        vmem_cap = int(pltpu.get_tpu_info().vmem_capacity_bytes)
    except Exception:
        vmem_cap = 64 * 1024 * 1024           # conservative (v7x-sized) fallback
    est = _vmem_bytes_estimate(tb, tq, dz, dh_p, dy,
                               jnp.dtype(z3.dtype).itemsize,
                               jnp.dtype(cd).itemsize,
                               jnp.dtype(out_dtype).itemsize)
    vmem_limit = int(min(max(2 * est, 32 * 1024 * 1024), int(vmem_cap * 0.85)))

    kernel = functools.partial(_mlp_kernel, compute_dtype=cd)
    out3 = pl.pallas_call(
        kernel,
        out_shape=jax.ShapeDtypeStruct((B, nt, dy), out_dtype),
        grid_spec=pltpu.PrefetchScalarGridSpec(
            num_scalar_prefetch=0,
            grid=grid,
            in_specs=[
                # Activation row tile; the token-axis block offset implements
                # zt = z[..., -nt:, :] with no wrapper copy.
                pl.BlockSpec((tb, tq, dz), lambda bi, ti: (bi, off_blk + ti, 0)),
                _resident_spec((dz, dh_p)),    # W1
                _resident_spec((1, dh_p)),     # b1
                _resident_spec((dh_p, dy)),    # W2
                _resident_spec((1, dy)),       # b2
            ],
            out_specs=pl.BlockSpec((tb, tq, dy), lambda bi, ti: (bi, ti, 0)),
        ),
        compiler_params=pltpu.CompilerParams(
            dimension_semantics=("parallel", "parallel"),
            vmem_limit_bytes=vmem_limit,
        ),
    )(z3, w1, b1, w2, b2)

    return out3.reshape(lead + (nt, dy))


def _reference(z, xt, w1, b1, w2, b2):
    zt = z[..., -xt.shape[-2]:, :]
    h = jnp.maximum(zt @ w1.reshape(zt.shape[-1], -1) + jnp.asarray(b1).reshape(1, -1), 0.0)
    return h @ w2 + jnp.asarray(b2).reshape(1, -1)


if __name__ == "__main__":
    # Small shapes consistent with the module's contract.
    m, n, nt = 2, 16, 8
    dz, dx, dh, dy = 32, 3, 64, 4

    key = jax.random.PRNGKey(0)
    kz, kx, k1, k2, k3, k4, kz4 = jax.random.split(key, 7)

    z = jax.random.normal(kz, (m, n, dz), dtype=jnp.float32)
    xt = jax.random.normal(kx, (m, nt, dx), dtype=jnp.float32)

    # Deterministic synthetic z_decoder parameters (2-layer MLP).
    w1 = jax.random.normal(k1, (dz, dh), dtype=jnp.float32) * 0.1
    b1 = jax.random.normal(k2, (1, dh), dtype=jnp.float32) * 0.1
    w2 = jax.random.normal(k3, (dh, dy), dtype=jnp.float32) * 0.1
    b2 = jax.random.normal(k4, (1, dy), dtype=jnp.float32) * 0.1

    ref = _reference(z, xt, w1, b1, w2, b2)

    # Exact f32 MXU path.
    out = tnpd_decoder(z, xt, w1, b1, w2, b2, compute_dtype=jnp.float32)
    jax.block_until_ready(out)
    assert out.shape == (m, nt, dy), out.shape
    assert jnp.allclose(out, ref, atol=1e-4, rtol=1e-4), "f32 mismatch vs reference"

    # Default bf16 MXU-input path (f32 accumulation) — looser tolerance.
    out_bf = tnpd_decoder(z, xt, w1, b1, w2, b2)
    jax.block_until_ready(out_bf)
    assert jnp.allclose(out_bf, ref, atol=5e-2, rtol=5e-2), "bf16 mismatch vs reference"

    # Extra leading dims, matching the module's `z: [m, ..., n, dz]` contract.
    z4 = jax.random.normal(kz4, (m, 3, n, dz), dtype=jnp.float32)
    out4 = tnpd_decoder(z4, xt, w1, b1, w2, b2, compute_dtype=jnp.float32)
    jax.block_until_ready(out4)
    ref4 = _reference(z4, xt, w1, b1, w2, b2)
    assert out4.shape == (m, 3, nt, dy), out4.shape
    assert jnp.allclose(out4, ref4, atol=1e-4, rtol=1e-4), "4D mismatch vs reference"

    # Unaligned slice offset (n - nt = 11) exercises the wrapper-slice fallback.
    xt5 = jax.random.normal(kx, (m, 5, dx), dtype=jnp.float32)
    out5 = tnpd_decoder(z, xt5, w1, b1, w2, b2, compute_dtype=jnp.float32)
    jax.block_until_ready(out5)
    ref5 = _reference(z, xt5, w1, b1, w2, b2)
    assert out5.shape == (m, 5, dy), out5.shape
    assert jnp.allclose(out5, ref5, atol=1e-4, rtol=1e-4), "fallback mismatch vs reference"

    print("KERNEL_OK")
</pallas_src>

<mosaic_0001>
module attributes {stable_mosaic.version = 11 : i64} {
  func.func @_mlp_kernel(%arg0: i32, %arg1: i32, %arg2: memref<1x8x32xf32, #tpu.memory_space<vmem>>, %arg3: memref<32x128xf32, #tpu.memory_space<vmem>>, %arg4: memref<1x128xf32, #tpu.memory_space<vmem>>, %arg5: memref<128x4xf32, #tpu.memory_space<vmem>>, %arg6: memref<1x4xf32, #tpu.memory_space<vmem>>, %arg7: memref<1x8x4xf32, #tpu.memory_space<vmem>>) attributes {dimension_semantics = [#tpu.dimension_semantics<parallel>, #tpu.dimension_semantics<parallel>], iteration_bounds = array<i64: 2, 1>, scalar_prefetch = 0 : i64, scratch_operands = 0 : i64, tpu.core_type = #tpu.core_type<tc>, window_params = [{transform_indices = @transform_0, window_bounds = array<i64: 1, 8, 32>}, {pipeline_mode = #tpu.pipeline_mode<synchronous>, transform_indices = @transform_1, window_bounds = array<i64: 32, 128>}, {pipeline_mode = #tpu.pipeline_mode<synchronous>, transform_indices = @transform_2, window_bounds = array<i64: 1, 128>}, {pipeline_mode = #tpu.pipeline_mode<synchronous>, transform_indices = @transform_3, window_bounds = array<i64: 128, 4>}, {pipeline_mode = #tpu.pipeline_mode<synchronous>, transform_indices = @transform_4, window_bounds = array<i64: 1, 4>}, {transform_indices = @transform_5, window_bounds = array<i64: 1, 8, 4>}]} {
    %c0 = arith.constant 0 : index
    %c0_0 = arith.constant 0 : index
    %c0_1 = arith.constant 0 : index
    %0 = vector.load %arg2[%c0, %c0_0, %c0_1] : memref<1x8x32xf32, #tpu.memory_space<vmem>>, vector<1x8x32xf32>
    %1 = vector.shape_cast %0 : vector<1x8x32xf32> to vector<8x32xf32>
    %c0_2 = arith.constant 0 : index
    %c0_3 = arith.constant 0 : index
    %2 = vector.load %arg3[%c0_2, %c0_3] : memref<32x128xf32, #tpu.memory_space<vmem>>, vector<32x128xf32>
    %cst = arith.constant dense<0.000000e+00> : vector<8x128xf32>
    %3 = tpu.matmul %1, %2, %cst {dimension_numbers = #tpu.dot_dimension_numbers<[1], [0], [0], [1], [0, 0, 1, 1], [], []>} : vector<8x32xf32>, vector<32x128xf32>, vector<8x128xf32> -> vector<8x128xf32>
    %c0_4 = arith.constant 0 : index
    %c0_5 = arith.constant 0 : index
    %4 = vector.load %arg4[%c0_4, %c0_5] : memref<1x128xf32, #tpu.memory_space<vmem>>, vector<1x128xf32>
    %5 = vector.broadcast %4 : vector<1x128xf32> to vector<8x128xf32>
    %6 = arith.addf %3, %5 : vector<8x128xf32>
    %cst_6 = arith.constant 0.000000e+00 : f32
    %7 = vector.broadcast %cst_6 : f32 to vector<8x128xf32>
    %8 = arith.maximumf %6, %7 : vector<8x128xf32>
    %c0_7 = arith.constant 0 : index
    %c0_8 = arith.constant 0 : index
    %9 = vector.load %arg5[%c0_7, %c0_8] : memref<128x4xf32, #tpu.memory_space<vmem>>, vector<128x4xf32>
    %cst_9 = arith.constant dense<0.000000e+00> : vector<8x4xf32>
    %10 = tpu.matmul %8, %9, %cst_9 {dimension_numbers = #tpu.dot_dimension_numbers<[1], [0], [0], [1], [0, 0, 1, 1], [], []>} : vector<8x128xf32>, vector<128x4xf32>, vector<8x4xf32> -> vector<8x4xf32>
    %c0_10 = arith.constant 0 : index
    %c0_11 = arith.constant 0 : index
    %11 = vector.load %arg6[%c0_10, %c0_11] : memref<1x4xf32, #tpu.memory_space<vmem>>, vector<1x4xf32>
    %12 = vector.broadcast %11 : vector<1x4xf32> to vector<8x4xf32>
    %13 = arith.addf %10, %12 : vector<8x4xf32>
    %14 = vector.shape_cast %13 : vector<8x4xf32> to vector<1x8x4xf32>
    %c0_12 = arith.constant 0 : index
    %c0_13 = arith.constant 0 : index
    %c0_14 = arith.constant 0 : index
    %15 = vector.load %arg7[%c0_12, %c0_13, %c0_14] : memref<1x8x4xf32, #tpu.memory_space<vmem>>, vector<1x8x4xf32>
    tpu.vector_store %arg7[%c0_12, %c0_13, %c0_14], %14 {strides = array<i32>} : memref<1x8x4xf32, #tpu.memory_space<vmem>>, vector<1x8x4xf32>,
    return
  }
  func.func @transform_0(%arg0: i32, %arg1: i32) -> (i32, i32, i32) {
    %c1_i32 = arith.constant 1 : i32
    %0 = arith.addi %c1_i32, %arg1 : i32
    %c0_i32 = arith.constant 0 : i32
    %c0_i32_0 = arith.constant 0 : i32
    return %arg0, %0, %c0_i32 : i32, i32, i32
  }
  func.func @transform_1(%arg0: i32, %arg1: i32) -> (i32, i32) {
    %c0_i32 = arith.constant 0 : i32
    %c0_i32_0 = arith.constant 0 : i32
    %c0_i32_1 = arith.constant 0 : i32
    return %c0_i32, %c0_i32_0 : i32, i32
  }
  func.func @transform_2(%arg0: i32, %arg1: i32) -> (i32, i32) {
    %c0_i32 = arith.constant 0 : i32
    %c0_i32_0 = arith.constant 0 : i32
    %c0_i32_1 = arith.constant 0 : i32
    return %c0_i32, %c0_i32_0 : i32, i32
  }
  func.func @transform_3(%arg0: i32, %arg1: i32) -> (i32, i32) {
    %c0_i32 = arith.constant 0 : i32
    %c0_i32_0 = arith.constant 0 : i32
    %c0_i32_1 = arith.constant 0 : i32
    return %c0_i32, %c0_i32_0 : i32, i32
  }
  func.func @transform_4(%arg0: i32, %arg1: i32) -> (i32, i32) {
    %c0_i32 = arith.constant 0 : i32
    %c0_i32_0 = arith.constant 0 : i32
    %c0_i32_1 = arith.constant 0 : i32
    return %c0_i32, %c0_i32_0 : i32, i32
  }
  func.func @transform_5(%arg0: i32, %arg1: i32) -> (i32, i32, i32) {
    %c0_i32 = arith.constant 0 : i32
    %c0_i32_0 = arith.constant 0 : i32
    return %arg0, %arg1, %c0_i32 : i32, i32, i32
  }
}

</mosaic_0001>

<llo_original>
// kernel: tpu_custom_call.1
$region0: #{tpu_custom_call.1}
  #allocation0 [shape = 'u32[]', space=smem, size = 0x4, offset = 0x4, fixed_abs, tag = 'smem constant byte address 0x4 - core index']
  #allocation1 [shape = 'u32[144,128]{1,0:T(1,128)}', space=vmem, size = 0x12000, scoped, tag = 'internal scratch']
  %s0 = inlined_call_operand.vmem [shape: f32[2,16,32], index: 0, kind: input, shape index: {}]
  %s1 = inlined_call_operand.vmem [shape: f32[32,128], index: 1, kind: input, shape index: {}]
  %s2 = inlined_call_operand.vmem [shape: f32[1,128], index: 2, kind: input, shape index: {}]
  %s3 = inlined_call_operand.vmem [shape: f32[128,4], index: 3, kind: input, shape index: {}]
  %s4 = inlined_call_operand.vmem [shape: f32[1,4], index: 4, kind: input, shape index: {}]
  %s5 = inlined_call_operand.vmem [shape: f32[2,8,4], index: 5, kind: output, shape index: {}]
  %s6 = sld [smem:[#allocation0]]
  $region53: #{tpu_custom_call.1} parent=0
    _
  %s8 = ssub.s32 1, %s6
  %s9 = scalar_select 0, %s8, %s6
  loop: start=0, step=1, limit=4
  $region2: #{tpu_custom_call.1} parent=0 // loop_pre_header
    _
  $region3: #{tpu_custom_call.1} parent=0 // loop_header
    %s11 = sphi 0, %s15
    %p12 = scmp.ge.s32.totalorder %s11, 4
    %s18 = sphi 0, %s30
    %s19 = sphi 0, %s26
    %s20 = sphi 0, %s18
    %s21 = sphi 0, %s19
    %s22 = sphi 0, %s20
    %s23 = sphi 0, %s21
    %s37 = sphi 0, %s39
    %s40 = sphi 0, %s37
    %s41 = sphi 0, %s40
    %s57 = sphi 0, %s41
    %s61 = sphi 0, %s61
    %s63 = sphi 0, %s61
    %s64 = sphi 0, %s63
    %s78 = sphi 0, %s64
    %s82 = sphi 0, %s82
    %s84 = sphi 0, %s82
    %s85 = sphi 0, %s84
    %s99 = sphi 0, %s85
    %s103 = sphi 0, %s103
    %s105 = sphi 0, %s103
    %s106 = sphi 0, %s105
    %s120 = sphi 0, %s106
    %s124 = sphi 0, %s124
    %s126 = sphi 0, %s124
    %s127 = sphi 0, %s126
    %s141 = sphi 0, %s127
    %s149 = sphi 0, %s151
    %s152 = sphi 0, %s149
    %s153 = sphi 0, %s152
    %s169 = sphi 0, %s153
  $region4: #{tpu_custom_call.1} parent=0 // loop_header_branch
    %14 = sbr.rel (%p12) target = $region8
  $region5: #{tpu_custom_call.1} parent=0 // loop_body
    %s16 = ssub.s32 %s11, 1
    %s17 = ssub.s32 %s11, 2
    %s24 = sadd.s32 1, %s19
    %p25 = scmp.ge.s32.totalorder %s24, 1
    %s26 = scalar_select %p25, 0, %s24
    %s27 = sadd.s32 1, %s18
    %s28 = scalar_select %p25, %s27, %s18
    %p29 = scmp.ge.s32.totalorder %s28, 2
    %s30 = scalar_select %p29, 0, %s28
    %s31 = sadd.s32 %s19, 1
    %s32 = sadd.s32 %s26, 1
    %s33 = ssub.s32 %s18, %s30
    %s34 = ssub.s32 %s31, %s32
    %s35 = sor.u32 %s33, %s34
    %p36 = scmp.eq.s32.totalorder %s35, 0
    %s38 = sadd.s32 %s37, 1
    %s39 = scalar_select %p36, %s37, %s38
    %p42 = pneg %p36
    %p43 = scmp.eq.s32.totalorder %s11, 1
    %p44 = por %p42, %p43
    %p45 = scmp.ne.s32.totalorder %s37, %s40
    %p46 = scmp.eq.s32.totalorder %s11, 0
    %p47 = por %p45, %p46
    %p48 = scmp.ne.s32.totalorder %s37, %s40
    %p49 = scmp.eq.s32.totalorder %s16, 1
    %p50 = por %p48, %p49
    %p51 = scmp.ne.s32.totalorder %s40, %s41
    %p52 = scmp.eq.s32.totalorder %s16, 0
    %p53 = por %p51, %p52
    %p54 = scmp.ne.s32.totalorder %s40, %s41
    %p55 = scmp.eq.s32.totalorder %s17, 1
    %p56 = por %p54, %p55
    %p58 = scmp.ne.s32.totalorder %s41, %s57
    %p59 = scmp.eq.s32.totalorder %s17, 0
    %p60 = por %p58, %p59
    %s62 = sadd.s32 %s61, 1
    %p65 = scmp.eq.s32.totalorder %s11, 1
    %p66 = scmp.ne.s32.totalorder %s61, %s63
    %p67 = scmp.eq.s32.totalorder %s11, 0
    %p68 = por %p66, %p67
    %p69 = scmp.ne.s32.totalorder %s61, %s63
    %p70 = scmp.eq.s32.totalorder %s16, 1
    %p71 = por %p69, %p70
    %p72 = scmp.ne.s32.totalorder %s63, %s64
    %p73 = scmp.eq.s32.totalorder %s16, 0
    %p74 = por %p72, %p73
    %p75 = scmp.ne.s32.totalorder %s63, %s64
    %p76 = scmp.eq.s32.totalorder %s17, 1
    %p77 = por %p75, %p76
    %p79 = scmp.ne.s32.totalorder %s64, %s78
    %p80 = scmp.eq.s32.totalorder %s17, 0
    %p81 = por %p79, %p80
    %s83 = sadd.s32 %s82, 1
    %p86 = scmp.eq.s32.totalorder %s11, 1
    %p87 = scmp.ne.s32.totalorder %s82, %s84
    %p88 = scmp.eq.s32.totalorder %s11, 0
    %p89 = por %p87, %p88
    %p90 = scmp.ne.s32.totalorder %s82, %s84
    %p91 = scmp.eq.s32.totalorder %s16, 1
    %p92 = por %p90, %p91
    %p93 = scmp.ne.s32.totalorder %s84, %s85
    %p94 = scmp.eq.s32.totalorder %s16, 0
    %p95 = por %p93, %p94
    %p96 = scmp.ne.s32.totalorder %s84, %s85
    %p97 = scmp.eq.s32.totalorder %s17, 1
    %p98 = por %p96, %p97
    %p100 = scmp.ne.s32.totalorder %s85, %s99
    %p101 = scmp.eq.s32.totalorder %s17, 0
    %p102 = por %p100, %p101
    %s104 = sadd.s32 %s103, 1
    %p107 = scmp.eq.s32.totalorder %s11, 1
    %p108 = scmp.ne.s32.totalorder %s103, %s105
    %p109 = scmp.eq.s32.totalorder %s11, 0
    %p110 = por %p108, %p109
    %p111 = scmp.ne.s32.totalorder %s103, %s105
    %p112 = scmp.eq.s32.totalorder %s16, 1
    %p113 = por %p111, %p112
    %p114 = scmp.ne.s32.totalorder %s105, %s106
    %p115 = scmp.eq.s32.totalorder %s16, 0
    %p116 = por %p114, %p115
    %p117 = scmp.ne.s32.totalorder %s105, %s106
    %p118 = scmp.eq.s32.totalorder %s17, 1
    %p119 = por %p117, %p118
    %p121 = scmp.ne.s32.totalorder %s106, %s120
    %p122 = scmp.eq.s32.totalorder %s17, 0
    %p123 = por %p121, %p122
    %s125 = sadd.s32 %s124, 1
    %p128 = scmp.eq.s32.totalorder %s11, 1
    %p129 = scmp.ne.s32.totalorder %s124, %s126
    %p130 = scmp.eq.s32.totalorder %s11, 0
    %p131 = por %p129, %p130
    %p132 = scmp.ne.s32.totalorder %s124, %s126
    %p133 = scmp.eq.s32.totalorder %s16, 1
    %p134 = por %p132, %p133
    %p135 = scmp.ne.s32.totalorder %s126, %s127
    %p136 = scmp.eq.s32.totalorder %s16, 0
    %p137 = por %p135, %p136
    %p138 = scmp.ne.s32.totalorder %s126, %s127
    %p139 = scmp.eq.s32.totalorder %s17, 1
    %p140 = por %p138, %p139
    %p142 = scmp.ne.s32.totalorder %s127, %s141
    %p143 = scmp.eq.s32.totalorder %s17, 0
    %p144 = por %p142, %p143
    %s145 = ssub.s32 %s18, %s30
    %s146 = ssub.s32 %s19, %s26
    %s147 = sor.u32 %s145, %s146
    %p148 = scmp.eq.s32.totalorder %s147, 0
    %s150 = sadd.s32 %s149, 1
    %s151 = scalar_select %p148, %s149, %s150
    %p154 = pneg %p148
    %p155 = scmp.eq.s32.totalorder %s11, 1
    %p156 = por %p154, %p155
    %p157 = scmp.ne.s32.totalorder %s149, %s152
    %p158 = scmp.eq.s32.totalorder %s11, 0
    %p159 = por %p157, %p158
    %p160 = scmp.ne.s32.totalorder %s149, %s152
    %p161 = scmp.eq.s32.totalorder %s16, 1
    %p162 = por %p160, %p161
    %p163 = scmp.ne.s32.totalorder %s152, %s153
    %p164 = scmp.eq.s32.totalorder %s16, 0
    %p165 = por %p163, %p164
    %p166 = scmp.ne.s32.totalorder %s152, %s153
    %p167 = scmp.eq.s32.totalorder %s17, 1
    %p168 = por %p166, %p167
    %p170 = scmp.ne.s32.totalorder %s153, %s169
    %p171 = scmp.eq.s32.totalorder %s17, 0
    %p172 = por %p170, %p171
    %p173 = scmp.le.s32.totalorder 1, %s11
    %p174 = scmp.lt.s32.totalorder %s11, 3
    %p175 = pnand %p173, %p174
    %p176 = pneg %p175
    // Predicated region
    $region9: #{tpu_custom_call.1} parent=5 // pred_check
      _
    $region10: #{tpu_custom_call.1} parent=5 // pred_check_branch
      %178 = sbr.rel (%p175) target = $region12
    $region11: #{tpu_custom_call.1} parent=5 // pred_region
      %s179 = ssub.s32 %s11, 1
      // Predicated region
      $region13: #{tpu_custom_call.1} parent=11 // pred_check
        %p180 = pneg %p74
      $region14: #{tpu_custom_call.1} parent=11 // pred_check_branch
        %182 = sbr.rel (%p180) target = $region16
      $region15: #{tpu_custom_call.1} parent=11 // pred_region
        _
      $region16: #{tpu_custom_call.1} parent=11 // pred_fallthru
        _
      // Predicated region
      $region17: #{tpu_custom_call.1} parent=11 // pred_check
        %p183 = pneg %p95
      $region18: #{tpu_custom_call.1} parent=11 // pred_check_branch
        %185 = sbr.rel (%p183) target = $region20
      $region19: #{tpu_custom_call.1} parent=11 // pred_region
        _
      $region20: #{tpu_custom_call.1} parent=11 // pred_fallthru
        _
      // Predicated region
      $region21: #{tpu_custom_call.1} parent=11 // pred_check
        %p186 = pneg %p116
      $region22: #{tpu_custom_call.1} parent=11 // pred_check_branch
        %188 = sbr.rel (%p186) target = $region24
      $region23: #{tpu_custom_call.1} parent=11 // pred_region
        _
      $region24: #{tpu_custom_call.1} parent=11 // pred_fallthru
        _
      // Predicated region
      $region25: #{tpu_custom_call.1} parent=11 // pred_check
        %p189 = pneg %p137
      $region26: #{tpu_custom_call.1} parent=11 // pred_check_branch
        %191 = sbr.rel (%p189) target = $region28
      $region27: #{tpu_custom_call.1} parent=11 // pred_region
        _
      $region28: #{tpu_custom_call.1} parent=11 // pred_fallthru
        _
    $region12: #{tpu_custom_call.1} parent=5 // pred_fallthru
      _
    %p192 = scmp.lt.s32.totalorder %s11, 2
    // Predicated region
    $region29: #{tpu_custom_call.1} parent=5 // pred_check
      %p193 = pneg %p192
    $region30: #{tpu_custom_call.1} parent=5 // pred_check_branch
      %195 = sbr.rel (%p193) target = $region32
    $region31: #{tpu_custom_call.1} parent=5 // pred_region
      // Predicated region
      $region33: #{tpu_custom_call.1} parent=31 // pred_check
        %p196 = pneg %p47
      $region34: #{tpu_custom_call.1} parent=31 // pred_check_branch
        %198 = sbr.rel (%p196) target = $region36
      $region35: #{tpu_custom_call.1} parent=31 // pred_region
        %s199 = sadd.s32 %s19, 1
        %p200 = scmp.lt.s32.totalorder %s18, 1
        %s201 = scalar_select %p200, %s18, 1
        %p202 = scmp.lt.s32.totalorder %s199, 1
        %s203 = scalar_select %p202, %s199, 1
        %s204 = smul.addr %s201, 2
        %s205 = sadd.s32 %s203, %s204
        %s206 = smul.addr %s205, 8
        %s207 = scalar_lea.vmem %s0, %s206
        %s208 = sadd.s32 %s19, 1
      $region36: #{tpu_custom_call.1} parent=31 // pred_fallthru
        _
    $region32: #{tpu_custom_call.1} parent=5 // pred_fallthru
      _
    %p209 = scmp.le.s32.totalorder 1, %s11
    %p210 = scmp.lt.s32.totalorder %s11, 3
    %p211 = pnand %p209, %p210
    %p212 = pneg %p211
    // Predicated region
    $region37: #{tpu_custom_call.1} parent=5 // pred_check
      _
    $region38: #{tpu_custom_call.1} parent=5 // pred_check_branch
      %214 = sbr.rel (%p211) target = $region40
    $region39: #{tpu_custom_call.1} parent=5 // pred_region
      %s215 = ssub.s32 %s11, 1
      %s216 = sadd.s32 %s21, 1
      %p217 = scmp.lt.s32.totalorder %s20, 1
      %s218 = scalar_select %p217, %s20, 1
      %p219 = scmp.lt.s32.totalorder %s216, 1
      %s220 = scalar_select %p219, %s216, 1
      %s221 = smul.addr %s218, 2
      %s222 = sadd.s32 %s220, %s221
      %s223 = smul.addr %s222, 8
      %s224 = scalar_lea.vmem %s0, %s223
      %p225 = pneg %p53
      %p226 = pneg %p50
      %p227 = pneg %p74
      %p228 = pneg %p71
      %p229 = pneg %p95
      %p230 = pneg %p92
      %p231 = pneg %p116
      %p232 = pneg %p113
      %p233 = pneg %p137
      %p234 = pneg %p134
      %p235 = pneg %p165
      %p236 = pneg %p162
      %p237 = scmp.lt.s32.totalorder %s20, 1
      %s238 = scalar_select %p237, %s20, 1
      %p239 = scmp.lt.s32.totalorder %s21, 0
      %s240 = scalar_select %p239, %s21, 0
      %s241 = sadd.s32 %s240, %s238
      %s242 = smul.addr %s241, 8
      %s243 = scalar_lea.vmem %s5, %s242
      %s244 = sadd.s32 %s21, 1
      %p245 = scmp.lt.s32.totalorder %s20, 1
      %s246 = scalar_select %p245, %s20, 1
      %p247 = scmp.lt.s32.totalorder %s244, 1
      %s248 = scalar_select %p247, %s244, 1
      %s249 = smul.addr %s246, 2
      %s250 = sadd.s32 %s248, %s249
      %s251 = smul.addr %s250, 8
      %s252 = scalar_lea.vmem %s0, %s251
      %s253 = sadd.s32 %s21, 1
      %p254 = scmp.lt.s32.totalorder %s20, 1
      %s255 = scalar_select %p254, %s20, 1
      %p256 = scmp.lt.s32.totalorder %s21, 0
      %s257 = scalar_select %p256, %s21, 0
      %s258 = sadd.s32 %s257, %s255
      %s259 = smul.addr %s258, 8
      %s260 = scalar_lea.vmem %s5, %s259
      %v261 = vld [vmem:[%s252] sm:$0xff]
      %v262 = vld [vmem:[%s1] sm:$0xff]
      %v263 = vld [vmem:[%s1 + $0x8] sm:$0xff]
      %v264 = vld [vmem:[%s1 + $0x10] sm:$0xff]
      %v265 = vld [vmem:[%s1 + $0x18] sm:$0xff]
      %v266 = vld [vmem:[%s2] sm:$0x1]
      %v268 = vlaneseq
      %v269 = vshrl.u32 %v268, 7
      %v270 = vsub.s32 0, %v269
      %v271 = vrot.slane %v266, %v270
      %vm273 = vcmask 261120
      %v275 = vsel %vm273, %v261, 0
      %277 = vmatprep.subr.mxu0 0.0
      %278 = vmatpush1.msra.mxu0 0.0
      %279 = vmatprep.subr.mxu0 0.0
      %280 = vmatpush1.msra.mxu0 0.0
      %281 = vmatprep.subr.mxu0 0.0
      %282 = vmatpush1.msra.mxu0 0.0
      %283 = vmatprep.subr.mxu0 0.0
      %284 = vmatpush1.msra.mxu0 0.0
      %285 = vmatprep.subr.mxu0 0.0
      %286 = vmatpush1.msra.mxu0 0.0
      %287 = vmatprep.subr.mxu0 0.0
      %288 = vmatpush1.msra.mxu0 0.0
      %289 = vmatprep.subr.mxu0 0.0
      %290 = vmatpush1.msra.mxu0 0.0
      %291 = vmatprep.subr.mxu0 0.0
      %292 = vmatpush1.msra.mxu0 0.0
      %293 = vmatprep.subr.mxu0 0.0
      %294 = vmatpush1.msra.mxu0 0.0
      %295 = vmatprep.subr.mxu0 0.0
      %296 = vmatpush1.msra.mxu0 0.0
      %297 = vmatprep.subr.mxu0 0.0
      %298 = vmatpush1.msra.mxu0 0.0
      %299 = vmatprep.subr.mxu0 0.0
      %300 = vmatpush1.msra.mxu0 0.0
      %301 = vmatprep.subr.mxu0 0.0
      %302 = vmatpush1.msra.mxu0 %v265
      %303 = vmatprep.subr.mxu0 0.0
      %304 = vmatpush1.msra.mxu0 %v264
      %305 = vmatprep.subr.mxu0 0.0
      %306 = vmatpush1.msra.mxu0 %v263
      %307 = vmatprep.subr.mxu0 0.0
      %308 = vmatpush1.msra.mxu0 %v262
      %309 = vmatprep.subr.mxu0 0.0
      %310 = vmatpush2.msra.mxu0 0.0
      %311 = vmatprep.subr.mxu0 0.0
      %312 = vmatpush2.msra.mxu0 0.0
      %313 = vmatprep.subr.mxu0 0.0
      %314 = vmatpush2.msra.mxu0 0.0
      %315 = vmatprep.subr.mxu0 0.0
      %316 = vmatpush2.msra.mxu0 0.0
      %317 = vmatprep.subr.mxu0 0.0
      %318 = vmatpush2.msra.mxu0 0.0
      %319 = vmatprep.subr.mxu0 0.0
      %320 = vmatpush2.msra.mxu0 0.0
      %321 = vmatprep.subr.mxu0 0.0
      %322 = vmatpush2.msra.mxu0 0.0
      %323 = vmatprep.subr.mxu0 0.0
      %324 = vmatpush2.msra.mxu0 0.0
      %325 = vmatprep.subr.mxu0 0.0
      %326 = vmatpush2.msra.mxu0 0.0
      %327 = vmatprep.subr.mxu0 0.0
      %328 = vmatpush2.msra.mxu0 0.0
      %329 = vmatprep.subr.mxu0 0.0
      %330 = vmatpush2.msra.mxu0 0.0
      %331 = vmatprep.subr.mxu0 0.0
      %332 = vmatpush2.msra.mxu0 0.0
      %333 = vmatprep.subr.mxu0 0.0
      %334 = vmatpush2.msra.mxu0 0.0
      %335 = vmatprep.subr.mxu0 0.0
      %336 = vmatpush2.msra.mxu0 0.0
      %337 = vmatprep.subr.mxu0 0.0
      %338 = vmatpush2.msra.mxu0 0.0
      %339 = vmatprep.subr.mxu0 0.0
      %340 = vmatpush2.msra.mxu0 0.0
      %341 = vmatprep.mubr.f32.mxu0 0.0
      %342 = vmatmul.mubr.f32.gmra.mxu0 %v275
      %v343 = vpop.f32.mrf.mxu0
      %v344 = vadd.f32 %v271, %v343
      %v345 = vpop.f32.mrf.mxu0
      %346 = vdwg.mxu0
      %v347 = vmax.f32 %v344, 0.0
      %v348 = vld [vmem:[%s3] sm:$0xff]
      %v349 = vld [vmem:[%s3 + $0x8] sm:$0xff]
      %v350 = vld [vmem:[%s3 + $0x10] sm:$0xff]
      %v351 = vld [vmem:[%s3 + $0x18] sm:$0xff]
      %v352 = vld [vmem:[%s3 + $0x20] sm:$0xff]
      %v353 = vld [vmem:[%s3 + $0x28] sm:$0xff]
      %v354 = vld [vmem:[%s3 + $0x30] sm:$0xff]
      %v355 = vld [vmem:[%s3 + $0x38] sm:$0xff]
      %v356 = vld [vmem:[%s3 + $0x40] sm:$0xff]
      %v357 = vld [vmem:[%s3 + $0x48] sm:$0xff]
      %v358 = vld [vmem:[%s3 + $0x50] sm:$0xff]
      %v359 = vld [vmem:[%s3 + $0x58] sm:$0xff]
      %v360 = vld [vmem:[%s3 + $0x60] sm:$0xff]
      %v361 = vld [vmem:[%s3 + $0x68] sm:$0xff]
      %v362 = vld [vmem:[%s3 + $0x70] sm:$0xff]
      %v363 = vld [vmem:[%s3 + $0x78] sm:$0xff]
      %v364 = vld [vmem:[%s4] sm:$0x1]
      %v366 = vlaneseq
      %v367 = vshrl.u32 %v366, 7
      %v368 = vsub.s32 0, %v367
      %v369 = vrot.slane %v364, %v368
      %371 = vmatprep.subr.mxu0 0.0
      %372 = vmatpush1.msra.mxu0 %v363
      %373 = vmatprep.subr.mxu0 0.0
      %374 = vmatpush1.msra.mxu0 %v362
      %375 = vmatprep.subr.mxu0 0.0
      %376 = vmatpush1.msra.mxu0 %v361
      %377 = vmatprep.subr.mxu0 0.0
      %378 = vmatpush1.msra.mxu0 %v360
      %379 = vmatprep.subr.mxu0 0.0
      %380 = vmatpush1.msra.mxu0 %v359
      %381 = vmatprep.subr.mxu0 0.0
      %382 = vmatpush1.msra.mxu0 %v358
      %383 = vmatprep.subr.mxu0 0.0
      %384 = vmatpush1.msra.mxu0 %v357
      %385 = vmatprep.subr.mxu0 0.0
      %386 = vmatpush1.msra.mxu0 %v356
      %387 = vmatprep.subr.mxu0 0.0
      %388 = vmatpush1.msra.mxu0 %v355
      %389 = vmatprep.subr.mxu0 0.0
      %390 = vmatpush1.msra.mxu0 %v354
      %391 = vmatprep.subr.mxu0 0.0
      %392 = vmatpush1.msra.mxu0 %v353
      %393 = vmatprep.subr.mxu0 0.0
      %394 = vmatpush1.msra.mxu0 %v352
      %395 = vmatprep.subr.mxu0 0.0
      %396 = vmatpush1.msra.mxu0 %v351
      %397 = vmatprep.subr.mxu0 0.0
      %398 = vmatpush1.msra.mxu0 %v350
      %399 = vmatprep.subr.mxu0 0.0
      %400 = vmatpush1.msra.mxu0 %v349
      %401 = vmatprep.subr.mxu0 0.0
      %402 = vmatpush1.msra.mxu0 %v348
      %403 = vmatprep.subr.mxu0 0.0
      %404 = vmatpush2.msra.mxu0 0.0
      %405 = vmatprep.subr.mxu0 0.0
      %406 = vmatpush2.msra.mxu0 0.0
      %407 = vmatprep.subr.mxu0 0.0
      %408 = vmatpush2.msra.mxu0 0.0
      %409 = vmatprep.subr.mxu0 0.0
      %410 = vmatpush2.msra.mxu0 0.0
      %411 = vmatprep.subr.mxu0 0.0
      %412 = vmatpush2.msra.mxu0 0.0
      %413 = vmatprep.subr.mxu0 0.0
      %414 = vmatpush2.msra.mxu0 0.0
      %415 = vmatprep.subr.mxu0 0.0
      %416 = vmatpush2.msra.mxu0 0.0
      %417 = vmatprep.subr.mxu0 0.0
      %418 = vmatpush2.msra.mxu0 0.0
      %419 = vmatprep.subr.mxu0 0.0
      %420 = vmatpush2.msra.mxu0 0.0
      %421 = vmatprep.subr.mxu0 0.0
      %422 = vmatpush2.msra.mxu0 0.0
      %423 = vmatprep.subr.mxu0 0.0
      %424 = vmatpush2.msra.mxu0 0.0
      %425 = vmatprep.subr.mxu0 0.0
      %426 = vmatpush2.msra.mxu0 0.0
      %427 = vmatprep.subr.mxu0 0.0
      %428 = vmatpush2.msra.mxu0 0.0
      %429 = vmatprep.subr.mxu0 0.0
      %430 = vmatpush2.msra.mxu0 0.0
      %431 = vmatprep.subr.mxu0 0.0
      %432 = vmatpush2.msra.mxu0 0.0
      %433 = vmatprep.subr.mxu0 0.0
      %434 = vmatpush2.msra.mxu0 0.0
      %435 = vmatprep.mubr.f32.mxu0 0.0
      %436 = vmatmul.mubr.f32.gmra.mxu0 %v347
      %v437 = vpop.f32.mrf.mxu0
      %v438 = vadd.f32 %v369, %v437
      %v439 = vpop.f32.mrf.mxu0
      %440 = vdwg.mxu0
      %vm441 = vcmask 31744
      %442 = vst.msk [vmem:[%s260] sm:$0xff] %vm441, %v438
      %p443 = scmp.lt.s32.totalorder %s20, 1
      %s444 = scalar_select %p443, %s20, 1
      %p445 = scmp.lt.s32.totalorder %s21, 0
      %s446 = scalar_select %p445, %s21, 0
      %s447 = sadd.s32 %s446, %s444
      %s448 = smul.addr %s447, 8
      %s449 = scalar_lea.vmem %s5, %s448
      // Predicated region
      $region41: #{tpu_custom_call.1} parent=39 // pred_check
        %p450 = pneg %p162
      $region42: #{tpu_custom_call.1} parent=39 // pred_check_branch
        %452 = sbr.rel (%p450) target = $region44
      $region43: #{tpu_custom_call.1} parent=39 // pred_region
        _
      $region44: #{tpu_custom_call.1} parent=39 // pred_fallthru
        _
    $region40: #{tpu_custom_call.1} parent=5 // pred_fallthru
      _
    %p453 = scmp.le.s32.totalorder 2, %s11
    // Predicated region
    $region45: #{tpu_custom_call.1} parent=5 // pred_check
      %p454 = pneg %p453
    $region46: #{tpu_custom_call.1} parent=5 // pred_check_branch
      %456 = sbr.rel (%p454) target = $region48
    $region47: #{tpu_custom_call.1} parent=5 // pred_region
      %s457 = ssub.s32 %s11, 2
      // Predicated region
      $region49: #{tpu_custom_call.1} parent=47 // pred_check
        %p458 = pneg %p168
      $region50: #{tpu_custom_call.1} parent=47 // pred_check_branch
        %460 = sbr.rel (%p458) target = $region52
      $region51: #{tpu_custom_call.1} parent=47 // pred_region
        %p461 = scmp.lt.s32.totalorder %s22, 1
        %s462 = scalar_select %p461, %s22, 1
        %p463 = scmp.lt.s32.totalorder %s23, 0
        %s464 = scalar_select %p463, %s23, 0
        %s465 = sadd.s32 %s464, %s462
        %s466 = smul.addr %s465, 8
        %s467 = scalar_lea.vmem %s5, %s466
      $region52: #{tpu_custom_call.1} parent=47 // pred_fallthru
        _
    $region48: #{tpu_custom_call.1} parent=5 // pred_fallthru
      _
  $region6: #{tpu_custom_call.1} parent=0 // loop_footer
    %s15 = sadd.s32 1, %s11
  $region7: #{tpu_custom_call.1} parent=0 // loop_footer_branch
    %10 = sbr.rel target = $region3
  $region8: #{tpu_custom_call.1} parent=0 // loop_exit
    _

</llo_original>
